<compile_context>
chip_gen: v5e
topology: v5e:2x2
jax: 0.10.0
libtpu: 0.0.40
codegen_flags: <defaults>
</compile_context>

<pallas_src>
import functools

import jax
import jax.numpy as jnp
from jax.experimental import pallas as pl
from jax.experimental.pallas import tpu as pltpu

_LANE = 128
_ACT_BYTES_CAP = 256 * 1024  # keep tile_b * widest_width * 4B under ~256 KiB


def _mlp_fused_kernel(*refs, num_layers):
    """refs = (x_ref, w0, b0, w1, b1, ..., w_{L-1}, b_{L-1}, o_ref).

    h = tanh(...tanh(x @ W0 + b0)...) @ W_{L-1} + b_{L-1}, all in-registers;
    only the final (lane-dense) result tile is stored.
    """
    x_ref = refs[0]
    o_ref = refs[-1]
    wb = refs[1:-1]

    h = x_ref[...]
    for layer in range(num_layers):
        w = wb[2 * layer][...]
        b = wb[2 * layer + 1][...]
        # Single cast of activations to the weight dtype for the MXU (no-op for
        # f32, native bf16 rate on v5e/v6e/v7x); accumulate in f32.
        h = jnp.dot(h.astype(w.dtype), w, preferred_element_type=jnp.float32)
        h = h + b.astype(jnp.float32)
        if layer != num_layers - 1:
            h = jnp.tanh(h)  # f32 tanh -> EUP slot (effectively free)
    o_ref[...] = h.astype(o_ref.dtype)


def _sublane_rows(itemsize):
    # f32 -> 8, bf16 -> 16, int8/fp8 -> 32 (packed-sublane granularity).
    return max(8, 32 // int(itemsize))


def _round_up(x, m):
    return ((x + m - 1) // m) * m


def _choose_tile_b(b_pad, sublane, widths):
    """Row tile: multiple of `sublane`, divides b_pad, <=512, at least 2 tiles
    when the batch allows it (v7x megacore), and small enough that the widest
    activation tile stays ~register resident."""
    widest = max(widths)
    row_cap = max(sublane, (_ACT_BYTES_CAP // (4 * widest)) // sublane * sublane)
    cap = min(512, row_cap, b_pad)
    if b_pad >= 2 * sublane:          # leave work for the 2nd TensorCore (v7x)
        cap = min(cap, b_pad // 2)
    tb = max(sublane, (cap // sublane) * sublane)
    while b_pad % tb != 0:            # b_pad is a multiple of sublane -> terminates
        tb -= sublane
    return tb


def mlp_critic_forward(params, x):
    """Forward pass matching MLPCritic.forward (tanh on all hidden layers,
    linear head; pure linear for num_layers == 1) as one fused Pallas kernel."""
    num_layers = len(params)
    B, Din = x.shape
    assert params[0][0].shape[0] == Din
    Dout = params[-1][0].shape[1]
    itemsize = jnp.dtype(x.dtype).itemsize

    # --- lane-dense final store: pad output_dim up to a multiple of 128 ------
    dout_pad = _round_up(Dout, _LANE)
    w_last, b_last = params[-1]
    if dout_pad != Dout:
        w_last = jnp.pad(w_last, ((0, 0), (0, dout_pad - Dout)))
        b_last = jnp.pad(b_last, ((0, 0), (0, dout_pad - Dout)))
    padded_params = list(params[:-1]) + [(w_last, b_last)]

    # --- batch padding (dtype sublane packing) + row tiling -------------------
    sublane = _sublane_rows(itemsize)
    b_pad = _round_up(B, sublane)
    if b_pad != B:
        x = jnp.pad(x, ((0, b_pad - B), (0, 0)))
    widths = [Din] + [int(w.shape[1]) for w, _ in padded_params]
    tile_b = _choose_tile_b(b_pad, sublane, widths)
    grid_b = b_pad // tile_b

    flat_params = [a for wb in padded_params for a in wb]

    # --- VMEM budget: x/out tiles double-buffered, weights resident -----------
    def vmem_bytes(weight_bufs):
        n = 2 * tile_b * Din * itemsize          # input  (double-buffered)
        n += 2 * tile_b * dout_pad * itemsize    # output (double-buffered)
        for w, b in padded_params:
            n += weight_bufs * (w.size * w.dtype.itemsize +
                                b.size * b.dtype.itemsize)
        return n

    # TODO(synk): if vmem_bytes() ever exceeds physical VMEM (~64 MiB on v7x,
    # ~128 MiB on v5e/v6e), fall back to keeping W_i in HBM
    # (BlockSpec(memory_space=pl.ANY)) and streaming K/N tiles with
    # pltpu.emit_pipeline instead of requiring full weight residency.

    flops = 2 * b_pad * sum(int(w.shape[0]) * int(w.shape[1])
                            for w, _ in padded_params)
    transcendentals = b_pad * sum(int(w.shape[1]) for w, _ in padded_params[:-1])
    bytes_accessed = int(
        x.size * itemsize
        + sum(w.size * w.dtype.itemsize + b.size * b.dtype.itemsize
              for w, b in padded_params)
        + b_pad * dout_pad * itemsize)

    def build(single_buffer_weights):
        vmem = pltpu.MemorySpace.VMEM
        weight_bufs = 1 if single_buffer_weights else 2
        wb_kwargs = {}
        if single_buffer_weights and hasattr(pl, "Buffered"):
            # Constant index_map -> a second buffer is pure VMEM waste.
            wb_kwargs["pipeline_mode"] = pl.Buffered(1)

        in_specs = [pl.BlockSpec((tile_b, Din), lambda i: (i, 0),
                                 memory_space=vmem)]
        for w, b in padded_params:
            din, dout = int(w.shape[0]), int(w.shape[1])
            in_specs.append(pl.BlockSpec((din, dout), lambda i: (0, 0),
                                         memory_space=vmem, **wb_kwargs))
            in_specs.append(pl.BlockSpec((1, dout), lambda i: (0, 0),
                                         memory_space=vmem, **wb_kwargs))
        out_spec = pl.BlockSpec((tile_b, dout_pad), lambda i: (i, 0),
                                memory_space=vmem)

        vmem_limit = min(128 * 1024 * 1024,
                         max(32 * 1024 * 1024,
                             int(vmem_bytes(weight_bufs) * 1.25)))

        kernel = functools.partial(_mlp_fused_kernel, num_layers=num_layers)
        return pl.pallas_call(
            kernel,
            out_shape=jax.ShapeDtypeStruct((b_pad, dout_pad), x.dtype),
            grid=(grid_b,),
            in_specs=in_specs,
            out_specs=out_spec,
            compiler_params=pltpu.CompilerParams(
                # "parallel" only matters for v7x megacore sharding; measured
                # no-op on single-TC v5e/v6e. A future streaming-K axis would be
                # appended last and marked "arbitrary".
                dimension_semantics=("parallel",),
                vmem_limit_bytes=vmem_limit,
            ),
            cost_estimate=pl.CostEstimate(
                flops=flops,
                transcendentals=transcendentals,
                bytes_accessed=bytes_accessed,
            ),
        )

    try:
        out = build(single_buffer_weights=True)(x, *flat_params)
    except Exception:
        # Older/newer Pallas may reject pl.Buffered(1); default double-buffering
        # is functionally identical, just 2x weight VMEM.
        out = build(single_buffer_weights=False)(x, *flat_params)

    return out[:B, :Dout]


def init_mlp_critic_params(key, num_layers, input_dim, hidden_dim, output_dim,
                           dtype=jnp.float32):
    """Deterministic init mimicking nn.Linear (uniform(-1/sqrt(fan_in), ...)).

    Weights stored [in_dim, out_dim] (transposed vs. PyTorch), bias [1, out_dim].
    Use dtype=jnp.bfloat16 on v6e/v7x for native-rate bf16 MXU weights.
    """
    if num_layers < 1:
        raise ValueError("number of layers should be positive!")
    dims = ([input_dim, output_dim]
            if num_layers == 1
            else [input_dim] + [hidden_dim] * (num_layers - 1) + [output_dim])
    params = []
    for i in range(len(dims) - 1):
        din, dout = dims[i], dims[i + 1]
        key, kw, kb = jax.random.split(key, 3)
        bound = 1.0 / jnp.sqrt(jnp.float32(din))
        w = jax.random.uniform(kw, (din, dout), jnp.float32, -bound, bound).astype(dtype)
        b = jax.random.uniform(kb, (1, dout), jnp.float32, -bound, bound).astype(dtype)
        params.append((w, b))
    return params


def mlp_critic_reference(params, x):
    """Plain-JAX f32 reference (highest matmul precision) for sanity checking."""
    n = len(params)
    h = x.astype(jnp.float32)
    for i, (w, b) in enumerate(params):
        h = jnp.dot(h, w.astype(jnp.float32),
                    precision=jax.lax.Precision.HIGHEST) + b.astype(jnp.float32)
        if i != n - 1:
            h = jnp.tanh(h)
    return h


if __name__ == "__main__":
    key = jax.random.PRNGKey(0)

    def check(num_layers, input_dim, hidden_dim, output_dim, batch, dtype,
              atol, rtol):
        k1, k2 = jax.random.split(jax.random.fold_in(key, 1000 * num_layers + batch))
        x = jax.random.normal(k1, (batch, input_dim), jnp.float32).astype(dtype)
        params = init_mlp_critic_params(k2, num_layers, input_dim, hidden_dim,
                                        output_dim, dtype=dtype)
        out = jax.block_until_ready(mlp_critic_forward(params, x))
        assert out.shape == (batch, output_dim)
        ref = mlp_critic_reference(params, x)
        assert jnp.allclose(out.astype(jnp.float32), ref, atol=atol, rtol=rtol), \
            (num_layers, str(dtype), batch)

    # Tolerances cover the MXU's default (bf16-pass) f32 matmul precision; the
    # reference is computed at HIGHEST precision.
    # 3-layer critic (tanh hidden, linear head), f32, demo batch.
    check(3, 32, 32, 1, 8, jnp.float32, 2e-2, 2e-2)
    # num_layers == 1 -> pure linear model.
    check(1, 32, 32, 1, 8, jnp.float32, 2e-2, 2e-2)
    # Larger batch: exercises batch tiling with >=2 grid steps (v7x megacore).
    check(3, 32, 32, 1, 64, jnp.float32, 2e-2, 2e-2)
    # Non-multiple-of-8 batch + output_dim > 1: exercises padding + slicing.
    check(2, 32, 32, 4, 37, jnp.float32, 2e-2, 2e-2)
    # bf16 params/activations (v6e/v7x path): f32 accumulation, looser tolerance.
    check(3, 32, 32, 1, 8, jnp.bfloat16, 6e-2, 6e-2)

    print("KERNEL_OK")
</pallas_src>

<mosaic_0001>
module attributes {stable_mosaic.version = 11 : i64} {
  func.func @_mlp_fused_kernel(%arg0: i32, %arg1: memref<8x32xf32, #tpu.memory_space<vmem>>, %arg2: memref<32x32xf32, #tpu.memory_space<vmem>>, %arg3: memref<1x32xf32, #tpu.memory_space<vmem>>, %arg4: memref<32x32xf32, #tpu.memory_space<vmem>>, %arg5: memref<1x32xf32, #tpu.memory_space<vmem>>, %arg6: memref<32x128xf32, #tpu.memory_space<vmem>>, %arg7: memref<1x128xf32, #tpu.memory_space<vmem>>, %arg8: memref<8x128xf32, #tpu.memory_space<vmem>>) attributes {dimension_semantics = [#tpu.dimension_semantics<parallel>], iteration_bounds = array<i64: 1>, scalar_prefetch = 0 : i64, scratch_operands = 0 : i64, tpu.core_type = #tpu.core_type<tc>, window_params = [{transform_indices = @transform_0, window_bounds = array<i64: 8, 32>}, {pipeline_mode = #tpu.pipeline_mode<synchronous>, transform_indices = @transform_1, window_bounds = array<i64: 32, 32>}, {pipeline_mode = #tpu.pipeline_mode<synchronous>, transform_indices = @transform_2, window_bounds = array<i64: 1, 32>}, {pipeline_mode = #tpu.pipeline_mode<synchronous>, transform_indices = @transform_3, window_bounds = array<i64: 32, 32>}, {pipeline_mode = #tpu.pipeline_mode<synchronous>, transform_indices = @transform_4, window_bounds = array<i64: 1, 32>}, {pipeline_mode = #tpu.pipeline_mode<synchronous>, transform_indices = @transform_5, window_bounds = array<i64: 32, 128>}, {pipeline_mode = #tpu.pipeline_mode<synchronous>, transform_indices = @transform_6, window_bounds = array<i64: 1, 128>}, {transform_indices = @transform_7, window_bounds = array<i64: 8, 128>}]} {
    %c0 = arith.constant 0 : index
    %c0_0 = arith.constant 0 : index
    %0 = vector.load %arg1[%c0, %c0_0] : memref<8x32xf32, #tpu.memory_space<vmem>>, vector<8x32xf32>
    %c0_1 = arith.constant 0 : index
    %c0_2 = arith.constant 0 : index
    %1 = vector.load %arg2[%c0_1, %c0_2] : memref<32x32xf32, #tpu.memory_space<vmem>>, vector<32x32xf32>
    %c0_3 = arith.constant 0 : index
    %c0_4 = arith.constant 0 : index
    %2 = vector.load %arg3[%c0_3, %c0_4] : memref<1x32xf32, #tpu.memory_space<vmem>>, vector<1x32xf32>
    %cst = arith.constant dense<0.000000e+00> : vector<8x32xf32>
    %3 = tpu.matmul %0, %1, %cst {dimension_numbers = #tpu.dot_dimension_numbers<[1], [0], [0], [1], [0, 0, 1, 1], [], []>} : vector<8x32xf32>, vector<32x32xf32>, vector<8x32xf32> -> vector<8x32xf32>
    %4 = vector.broadcast %2 : vector<1x32xf32> to vector<8x32xf32>
    %5 = arith.addf %3, %4 : vector<8x32xf32>
    %6 = math.tanh %5 : vector<8x32xf32>
    %c0_5 = arith.constant 0 : index
    %c0_6 = arith.constant 0 : index
    %7 = vector.load %arg4[%c0_5, %c0_6] : memref<32x32xf32, #tpu.memory_space<vmem>>, vector<32x32xf32>
    %c0_7 = arith.constant 0 : index
    %c0_8 = arith.constant 0 : index
    %8 = vector.load %arg5[%c0_7, %c0_8] : memref<1x32xf32, #tpu.memory_space<vmem>>, vector<1x32xf32>
    %cst_9 = arith.constant dense<0.000000e+00> : vector<8x32xf32>
    %9 = tpu.matmul %6, %7, %cst_9 {dimension_numbers = #tpu.dot_dimension_numbers<[1], [0], [0], [1], [0, 0, 1, 1], [], []>} : vector<8x32xf32>, vector<32x32xf32>, vector<8x32xf32> -> vector<8x32xf32>
    %10 = vector.broadcast %8 : vector<1x32xf32> to vector<8x32xf32>
    %11 = arith.addf %9, %10 : vector<8x32xf32>
    %12 = math.tanh %11 : vector<8x32xf32>
    %c0_10 = arith.constant 0 : index
    %c0_11 = arith.constant 0 : index
    %13 = vector.load %arg6[%c0_10, %c0_11] : memref<32x128xf32, #tpu.memory_space<vmem>>, vector<32x128xf32>
    %c0_12 = arith.constant 0 : index
    %c0_13 = arith.constant 0 : index
    %14 = vector.load %arg7[%c0_12, %c0_13] : memref<1x128xf32, #tpu.memory_space<vmem>>, vector<1x128xf32>
    %cst_14 = arith.constant dense<0.000000e+00> : vector<8x128xf32>
    %15 = tpu.matmul %12, %13, %cst_14 {dimension_numbers = #tpu.dot_dimension_numbers<[1], [0], [0], [1], [0, 0, 1, 1], [], []>} : vector<8x32xf32>, vector<32x128xf32>, vector<8x128xf32> -> vector<8x128xf32>
    %16 = vector.broadcast %14 : vector<1x128xf32> to vector<8x128xf32>
    %17 = arith.addf %15, %16 : vector<8x128xf32>
    %c0_15 = arith.constant 0 : index
    %c0_16 = arith.constant 0 : index
    %18 = vector.load %arg8[%c0_15, %c0_16] : memref<8x128xf32, #tpu.memory_space<vmem>>, vector<8x128xf32>
    tpu.vector_store %arg8[%c0_15, %c0_16], %17 {strides = array<i32>} : memref<8x128xf32, #tpu.memory_space<vmem>>, vector<8x128xf32>,
    return
  }
  func.func @transform_0(%arg0: i32) -> (i32, i32) {
    %c0_i32 = arith.constant 0 : i32
    %c0_i32_0 = arith.constant 0 : i32
    return %arg0, %c0_i32 : i32, i32
  }
  func.func @transform_1(%arg0: i32) -> (i32, i32) {
    %c0_i32 = arith.constant 0 : i32
    %c0_i32_0 = arith.constant 0 : i32
    %c0_i32_1 = arith.constant 0 : i32
    return %c0_i32, %c0_i32_0 : i32, i32
  }
  func.func @transform_2(%arg0: i32) -> (i32, i32) {
    %c0_i32 = arith.constant 0 : i32
    %c0_i32_0 = arith.constant 0 : i32
    %c0_i32_1 = arith.constant 0 : i32
    return %c0_i32, %c0_i32_0 : i32, i32
  }
  func.func @transform_3(%arg0: i32) -> (i32, i32) {
    %c0_i32 = arith.constant 0 : i32
    %c0_i32_0 = arith.constant 0 : i32
    %c0_i32_1 = arith.constant 0 : i32
    return %c0_i32, %c0_i32_0 : i32, i32
  }
  func.func @transform_4(%arg0: i32) -> (i32, i32) {
    %c0_i32 = arith.constant 0 : i32
    %c0_i32_0 = arith.constant 0 : i32
    %c0_i32_1 = arith.constant 0 : i32
    return %c0_i32, %c0_i32_0 : i32, i32
  }
  func.func @transform_5(%arg0: i32) -> (i32, i32) {
    %c0_i32 = arith.constant 0 : i32
    %c0_i32_0 = arith.constant 0 : i32
    %c0_i32_1 = arith.constant 0 : i32
    return %c0_i32, %c0_i32_0 : i32, i32
  }
  func.func @transform_6(%arg0: i32) -> (i32, i32) {
    %c0_i32 = arith.constant 0 : i32
    %c0_i32_0 = arith.constant 0 : i32
    %c0_i32_1 = arith.constant 0 : i32
    return %c0_i32, %c0_i32_0 : i32, i32
  }
  func.func @transform_7(%arg0: i32) -> (i32, i32) {
    %c0_i32 = arith.constant 0 : i32
    %c0_i32_0 = arith.constant 0 : i32
    return %arg0, %c0_i32 : i32, i32
  }
}

module attributes {stable_mosaic.version = 11 : i64} {
  func.func @_mlp_fused_kernel(%arg0: i32, %arg1: memref<8x32xf32, #tpu.memory_space<vmem>>, %arg2: memref<32x32xf32, #tpu.memory_space<vmem>>, %arg3: memref<1x32xf32, #tpu.memory_space<vmem>>, %arg4: memref<32x32xf32, #tpu.memory_space<vmem>>, %arg5: memref<1x32xf32, #tpu.memory_space<vmem>>, %arg6: memref<32x128xf32, #tpu.memory_space<vmem>>, %arg7: memref<1x128xf32, #tpu.memory_space<vmem>>, %arg8: memref<8x128xf32, #tpu.memory_space<vmem>>) attributes {dimension_semantics = [#tpu.dimension_semantics<parallel>], iteration_bounds = array<i64: 1>, scalar_prefetch = 0 : i64, scratch_operands = 0 : i64, tpu.core_type = #tpu.core_type<tc>, window_params = [{transform_indices = @transform_0, window_bounds = array<i64: 8, 32>}, {pipeline_mode = #tpu.pipeline_mode<synchronous>, transform_indices = @transform_1, window_bounds = array<i64: 32, 32>}, {pipeline_mode = #tpu.pipeline_mode<synchronous>, transform_indices = @transform_2, window_bounds = array<i64: 1, 32>}, {pipeline_mode = #tpu.pipeline_mode<synchronous>, transform_indices = @transform_3, window_bounds = array<i64: 32, 32>}, {pipeline_mode = #tpu.pipeline_mode<synchronous>, transform_indices = @transform_4, window_bounds = array<i64: 1, 32>}, {pipeline_mode = #tpu.pipeline_mode<synchronous>, transform_indices = @transform_5, window_bounds = array<i64: 32, 128>}, {pipeline_mode = #tpu.pipeline_mode<synchronous>, transform_indices = @transform_6, window_bounds = array<i64: 1, 128>}, {transform_indices = @transform_7, window_bounds = array<i64: 8, 128>}]} {
    %c0 = arith.constant 0 : index
    %c0_0 = arith.constant 0 : index
    %0 = vector.load %arg1[%c0, %c0_0] : memref<8x32xf32, #tpu.memory_space<vmem>>, vector<8x32xf32>
    %c0_1 = arith.constant 0 : index
    %c0_2 = arith.constant 0 : index
    %1 = vector.load %arg2[%c0_1, %c0_2] : memref<32x32xf32, #tpu.memory_space<vmem>>, vector<32x32xf32>
    %c0_3 = arith.constant 0 : index
    %c0_4 = arith.constant 0 : index
    %2 = vector.load %arg3[%c0_3, %c0_4] : memref<1x32xf32, #tpu.memory_space<vmem>>, vector<1x32xf32>
    %cst = arith.constant dense<0.000000e+00> : vector<8x32xf32>
    %3 = tpu.matmul %0, %1, %cst {dimension_numbers = #tpu.dot_dimension_numbers<[1], [0], [0], [1], [0, 0, 1, 1], [], []>} : vector<8x32xf32>, vector<32x32xf32>, vector<8x32xf32> -> vector<8x32xf32>
    %4 = vector.broadcast %2 : vector<1x32xf32> to vector<8x32xf32>
    %5 = arith.addf %3, %4 : vector<8x32xf32>
    %6 = math.tanh %5 : vector<8x32xf32>
    %c0_5 = arith.constant 0 : index
    %c0_6 = arith.constant 0 : index
    %7 = vector.load %arg4[%c0_5, %c0_6] : memref<32x32xf32, #tpu.memory_space<vmem>>, vector<32x32xf32>
    %c0_7 = arith.constant 0 : index
    %c0_8 = arith.constant 0 : index
    %8 = vector.load %arg5[%c0_7, %c0_8] : memref<1x32xf32, #tpu.memory_space<vmem>>, vector<1x32xf32>
    %cst_9 = arith.constant dense<0.000000e+00> : vector<8x32xf32>
    %9 = tpu.matmul %6, %7, %cst_9 {dimension_numbers = #tpu.dot_dimension_numbers<[1], [0], [0], [1], [0, 0, 1, 1], [], []>} : vector<8x32xf32>, vector<32x32xf32>, vector<8x32xf32> -> vector<8x32xf32>
    %10 = vector.broadcast %8 : vector<1x32xf32> to vector<8x32xf32>
    %11 = arith.addf %9, %10 : vector<8x32xf32>
    %12 = math.tanh %11 : vector<8x32xf32>
    %c0_10 = arith.constant 0 : index
    %c0_11 = arith.constant 0 : index
    %13 = vector.load %arg6[%c0_10, %c0_11] : memref<32x128xf32, #tpu.memory_space<vmem>>, vector<32x128xf32>
    %c0_12 = arith.constant 0 : index
    %c0_13 = arith.constant 0 : index
    %14 = vector.load %arg7[%c0_12, %c0_13] : memref<1x128xf32, #tpu.memory_space<vmem>>, vector<1x128xf32>
    %cst_14 = arith.constant dense<0.000000e+00> : vector<8x128xf32>
    %15 = tpu.matmul %12, %13, %cst_14 {dimension_numbers = #tpu.dot_dimension_numbers<[1], [0], [0], [1], [0, 0, 1, 1], [], []>} : vector<8x32xf32>, vector<32x128xf32>, vector<8x128xf32> -> vector<8x128xf32>
    %16 = vector.broadcast %14 : vector<1x128xf32> to vector<8x128xf32>
    %17 = arith.addf %15, %16 : vector<8x128xf32>
    %c0_15 = arith.constant 0 : index
    %c0_16 = arith.constant 0 : index
    %18 = vector.load %arg8[%c0_15, %c0_16] : memref<8x128xf32, #tpu.memory_space<vmem>>, vector<8x128xf32>
    tpu.vector_store %arg8[%c0_15, %c0_16], %17 {strides = array<i32>} : memref<8x128xf32, #tpu.memory_space<vmem>>, vector<8x128xf32>,
    return
  }
  func.func @transform_0(%arg0: i32) -> (i32, i32) {
    %c0_i32 = arith.constant 0 : i32
    %c0_i32_0 = arith.constant 0 : i32
    return %arg0, %c0_i32 : i32, i32
  }
  func.func @transform_1(%arg0: i32) -> (i32, i32) {
    %c0_i32 = arith.constant 0 : i32
    %c0_i32_0 = arith.constant 0 : i32
    %c0_i32_1 = arith.constant 0 : i32
    return %c0_i32, %c0_i32_0 : i32, i32
  }
  func.func @transform_2(%arg0: i32) -> (i32, i32) {
    %c0_i32 = arith.constant 0 : i32
    %c0_i32_0 = arith.constant 0 : i32
    %c0_i32_1 = arith.constant 0 : i32
    return %c0_i32, %c0_i32_0 : i32, i32
  }
  func.func @transform_3(%arg0: i32) -> (i32, i32) {
    %c0_i32 = arith.constant 0 : i32
    %c0_i32_0 = arith.constant 0 : i32
    %c0_i32_1 = arith.constant 0 : i32
    return %c0_i32, %c0_i32_0 : i32, i32
  }
  func.func @transform_4(%arg0: i32) -> (i32, i32) {
    %c0_i32 = arith.constant 0 : i32
    %c0_i32_0 = arith.constant 0 : i32
    %c0_i32_1 = arith.constant 0 : i32
    return %c0_i32, %c0_i32_0 : i32, i32
  }
  func.func @transform_5(%arg0: i32) -> (i32, i32) {
    %c0_i32 = arith.constant 0 : i32
    %c0_i32_0 = arith.constant 0 : i32
    %c0_i32_1 = arith.constant 0 : i32
    return %c0_i32, %c0_i32_0 : i32, i32
  }
  func.func @transform_6(%arg0: i32) -> (i32, i32) {
    %c0_i32 = arith.constant 0 : i32
    %c0_i32_0 = arith.constant 0 : i32
    %c0_i32_1 = arith.constant 0 : i32
    return %c0_i32, %c0_i32_0 : i32, i32
  }
  func.func @transform_7(%arg0: i32) -> (i32, i32) {
    %c0_i32 = arith.constant 0 : i32
    %c0_i32_0 = arith.constant 0 : i32
    return %arg0, %c0_i32 : i32, i32
  }
}

</mosaic_0001>

<llo_original>
// kernel: tpu_custom_call.1
$region0: #{tpu_custom_call.1}
  #allocation0 [shape = 'u32[]', space=smem, size = 0x4, offset = 0x4, fixed_abs, tag = 'smem constant byte address 0x4 - core index']
  #allocation1 [shape = 'u32[72,128]{1,0:T(1,128)}', space=vmem, size = 0x9000, scoped, tag = 'internal scratch']
  %s0 = inlined_call_operand.hbm [shape: f32[8,32], index: 0, kind: input, shape index: {}]
  %s1 = inlined_call_operand.hbm [shape: f32[32,32], index: 1, kind: input, shape index: {}]
  %s2 = inlined_call_operand.vmem [shape: f32[1,32], index: 2, kind: input, shape index: {}]
  %s3 = inlined_call_operand.hbm [shape: f32[32,32], index: 3, kind: input, shape index: {}]
  %s4 = inlined_call_operand.vmem [shape: f32[1,32], index: 4, kind: input, shape index: {}]
  %s5 = inlined_call_operand.hbm [shape: f32[32,128], index: 5, kind: input, shape index: {}]
  %s6 = inlined_call_operand.vmem [shape: f32[1,128], index: 6, kind: input, shape index: {}]
  %s7 = inlined_call_operand.hbm [shape: f32[8,128], index: 7, kind: output, shape index: {}]
  %s8 = sld [smem:[#allocation0]]
  $region54: #{tpu_custom_call.1} parent=0
    _
  %s10 = ssub.s32 1, %s8
  %s11 = scalar_select 0, %s10, %s8
  $region1: #{tpu_custom_call.1} parent=0
    #allocation2 [shape = 'u8[4096]{0}', space=vmem, size = 0x1000, scoped, tag = 'input window, operand 0, single buffered']
    #allocation3 [shape = 's32[1]{0}', space=sflag, size = 0x4, scoped, tag = 'scoped memory for tpu_custom_call.1']
    #allocation4 [shape = 's32[1]{0}', space=sflag, size = 0x4, scoped, tag = 'scoped memory for tpu_custom_call.1']
    #allocation5 [shape = 'u8[16384]{0}', space=vmem, size = 0x4000, scoped, tag = 'input window, operand 1, single buffered']
    #allocation6 [shape = 's32[1]{0}', space=sflag, size = 0x4, scoped, tag = 'scoped memory for tpu_custom_call.1']
    #allocation7 [shape = 'u8[16384]{0}', space=vmem, size = 0x4000, scoped, tag = 'input window, operand 3, single buffered']
    #allocation8 [shape = 'u8[16384]{0}', space=vmem, size = 0x4000, scoped, tag = 'input window, operand 5, single buffered']
    #allocation9 [shape = 's32[1]{0}', space=sflag, size = 0x4, scoped, tag = 'scoped memory for tpu_custom_call.1']
    #allocation10 [shape = 'u8[4096]{0}', space=vmem, size = 0x1000, scoped, tag = 'output window, operand 0, single buffered']
    %12 = vsyncpa [#allocation3], 0
    %13 = vsyncpa [#allocation6], 0
    %14 = vsyncpa [#allocation9], 0
    %15 = vsyncpa [#allocation4], 0
    // Predicated region
    $region2: #{tpu_custom_call.1} parent=1 // pred_check
      _
    $region3: #{tpu_custom_call.1} parent=1 // pred_check_branch
      %17 = sbr.rel (0) target = $region5
    $region4: #{tpu_custom_call.1} parent=1 // pred_region
      %19 = vsyncadd [#allocation3], 0
      %s21 = sshll.u32 %s0, 4
      %s22 = int_to_ptr.hbm [resolvable:$true] %s21
      %s23 = sshll.u32 [#allocation2], 4
      %s24 = int_to_ptr.vmem [resolvable:$true] %s23
      %26 = dma.hbm_to_vmem [thread:$0]  %s22, 128, %s24, [#allocation3]
    $region5: #{tpu_custom_call.1} parent=1 // pred_fallthru
      _
    // Predicated region
    $region6: #{tpu_custom_call.1} parent=1 // pred_check
      _
    $region7: #{tpu_custom_call.1} parent=1 // pred_check_branch
      %28 = sbr.rel (0) target = $region9
    $region8: #{tpu_custom_call.1} parent=1 // pred_region
      %30 = vsyncadd [#allocation6], 0
      %s31 = sshll.u32 %s1, 4
      %s32 = int_to_ptr.hbm [resolvable:$true] %s31
      %s33 = sshll.u32 [#allocation5], 4
      %s34 = int_to_ptr.vmem [resolvable:$true] %s33
      %39 = dma.hbm_to_vmem [thread:$0]  %s32, 512, %s34, [#allocation6], 128, 128, 8
    $region9: #{tpu_custom_call.1} parent=1 // pred_fallthru
      _
    // Predicated region
    $region10: #{tpu_custom_call.1} parent=1 // pred_check
      _
    $region11: #{tpu_custom_call.1} parent=1 // pred_check_branch
      %41 = sbr.rel (0) target = $region13
    $region12: #{tpu_custom_call.1} parent=1 // pred_region
      _
    $region13: #{tpu_custom_call.1} parent=1 // pred_fallthru
      _
    // Predicated region
    $region14: #{tpu_custom_call.1} parent=1 // pred_check
      _
    $region15: #{tpu_custom_call.1} parent=1 // pred_check_branch
      %43 = sbr.rel (0) target = $region17
    $region16: #{tpu_custom_call.1} parent=1 // pred_region
      %45 = vsyncadd [#allocation6], 0
      %s46 = sshll.u32 %s3, 4
      %s47 = int_to_ptr.hbm [resolvable:$true] %s46
      %s48 = sshll.u32 [#allocation7], 4
      %s49 = int_to_ptr.vmem [resolvable:$true] %s48
      %54 = dma.hbm_to_vmem [thread:$0]  %s47, 512, %s49, [#allocation6], 128, 128, 8
    $region17: #{tpu_custom_call.1} parent=1 // pred_fallthru
      _
    // Predicated region
    $region18: #{tpu_custom_call.1} parent=1 // pred_check
      _
    $region19: #{tpu_custom_call.1} parent=1 // pred_check_branch
      %56 = sbr.rel (0) target = $region21
    $region20: #{tpu_custom_call.1} parent=1 // pred_region
      _
    $region21: #{tpu_custom_call.1} parent=1 // pred_fallthru
      _
    // Predicated region
    $region22: #{tpu_custom_call.1} parent=1 // pred_check
      _
    $region23: #{tpu_custom_call.1} parent=1 // pred_check_branch
      %58 = sbr.rel (0) target = $region25
    $region24: #{tpu_custom_call.1} parent=1 // pred_region
      %60 = vsyncadd [#allocation9], 0
      %s61 = sshll.u32 %s5, 4
      %s62 = int_to_ptr.hbm [resolvable:$true] %s61
      %s63 = sshll.u32 [#allocation8], 4
      %s64 = int_to_ptr.vmem [resolvable:$true] %s63
      %69 = dma.hbm_to_vmem [thread:$0]  %s62, 512, %s64, [#allocation9], 128, 128, 8
    $region25: #{tpu_custom_call.1} parent=1 // pred_fallthru
      _
    // Predicated region
    $region26: #{tpu_custom_call.1} parent=1 // pred_check
      _
    $region27: #{tpu_custom_call.1} parent=1 // pred_check_branch
      %71 = sbr.rel (0) target = $region29
    $region28: #{tpu_custom_call.1} parent=1 // pred_region
      _
    $region29: #{tpu_custom_call.1} parent=1 // pred_fallthru
      _
    // Predicated region
    $region30: #{tpu_custom_call.1} parent=1 // pred_check
      _
    $region31: #{tpu_custom_call.1} parent=1 // pred_check_branch
      %73 = sbr.rel (0) target = $region33
    $region32: #{tpu_custom_call.1} parent=1 // pred_region
      %75 = dma.done [#allocation3], 128
    $region33: #{tpu_custom_call.1} parent=1 // pred_fallthru
      _
    // Predicated region
    $region34: #{tpu_custom_call.1} parent=1 // pred_check
      _
    $region35: #{tpu_custom_call.1} parent=1 // pred_check_branch
      %77 = sbr.rel (0) target = $region37
    $region36: #{tpu_custom_call.1} parent=1 // pred_region
      %79 = dma.done [#allocation6], 512
    $region37: #{tpu_custom_call.1} parent=1 // pred_fallthru
      _
    // Predicated region
    $region38: #{tpu_custom_call.1} parent=1 // pred_check
      _
    $region39: #{tpu_custom_call.1} parent=1 // pred_check_branch
      %81 = sbr.rel (0) target = $region41
    $region40: #{tpu_custom_call.1} parent=1 // pred_region
      %83 = dma.done [#allocation6], 512
    $region41: #{tpu_custom_call.1} parent=1 // pred_fallthru
      _
    // Predicated region
    $region42: #{tpu_custom_call.1} parent=1 // pred_check
      _
    $region43: #{tpu_custom_call.1} parent=1 // pred_check_branch
      %85 = sbr.rel (0) target = $region45
    $region44: #{tpu_custom_call.1} parent=1 // pred_region
      %87 = dma.done [#allocation9], 512
    $region45: #{tpu_custom_call.1} parent=1 // pred_fallthru
      _
    %v88 = vld [vmem:[#allocation2] sm:$0xff]
    %v89 = vld [vmem:[#allocation5] sm:$0xff]
    %v90 = vld [vmem:[#allocation5 + $0x8] sm:$0xff]
    %v91 = vld [vmem:[#allocation5 + $0x10] sm:$0xff]
    %v92 = vld [vmem:[#allocation5 + $0x18] sm:$0xff]
    %v93 = vld [vmem:[%s2] sm:$0x1]
    %v95 = vperm.slane %v93, 0
    %vm97 = vcmask 261120
    %v99 = vsel %vm97, %v88, 0
    %101 = vmatpush.msra.mxu0 0.0
    %102 = vmatpush.msra.mxu0 0.0
    %103 = vmatpush.msra.mxu0 0.0
    %104 = vmatpush.msra.mxu0 0.0
    %105 = vmatpush.msra.mxu0 0.0
    %106 = vmatpush.msra.mxu0 0.0
    %107 = vmatpush.msra.mxu0 0.0
    %108 = vmatpush.msra.mxu0 0.0
    %109 = vmatpush.msra.mxu0 0.0
    %110 = vmatpush.msra.mxu0 0.0
    %111 = vmatpush.msra.mxu0 0.0
    %112 = vmatpush.msra.mxu0 0.0
    %113 = vmatpush.msra.mxu0 %v92
    %114 = vmatpush.msra.mxu0 %v91
    %115 = vmatpush.msra.mxu0 %v90
    %116 = vmatpush.msra.mxu0 %v89
    %117 = vmatmul.f32.gmra.mxu0 %v99
    %v118 = vpop.f32.mrf.mxu0
    %v119 = vadd.f32 %v95, %v118
    %120 = vdwg.mxu0
    %v121 = vtanh.pop %v119
    %v122 = vld [vmem:[#allocation7] sm:$0xff]
    %v123 = vld [vmem:[#allocation7 + $0x8] sm:$0xff]
    %v124 = vld [vmem:[#allocation7 + $0x10] sm:$0xff]
    %v125 = vld [vmem:[#allocation7 + $0x18] sm:$0xff]
    %v126 = vld [vmem:[%s4] sm:$0x1]
    %v128 = vperm.slane %v126, 0
    %v131 = vsel %vm97, %v121, 0
    %133 = vmatpush.msra.mxu0 0.0
    %134 = vmatpush.msra.mxu0 0.0
    %135 = vmatpush.msra.mxu0 0.0
    %136 = vmatpush.msra.mxu0 0.0
    %137 = vmatpush.msra.mxu0 0.0
    %138 = vmatpush.msra.mxu0 0.0
    %139 = vmatpush.msra.mxu0 0.0
    %140 = vmatpush.msra.mxu0 0.0
    %141 = vmatpush.msra.mxu0 0.0
    %142 = vmatpush.msra.mxu0 0.0
    %143 = vmatpush.msra.mxu0 0.0
    %144 = vmatpush.msra.mxu0 0.0
    %145 = vmatpush.msra.mxu0 %v125
    %146 = vmatpush.msra.mxu0 %v124
    %147 = vmatpush.msra.mxu0 %v123
    %148 = vmatpush.msra.mxu0 %v122
    %149 = vmatmul.f32.gmra.mxu0 %v131
    %v150 = vpop.f32.mrf.mxu0
    %v151 = vadd.f32 %v128, %v150
    %152 = vdwg.mxu0
    %v153 = vtanh.pop %v151
    %v154 = vld [vmem:[#allocation8] sm:$0xff]
    %v155 = vld [vmem:[#allocation8 + $0x8] sm:$0xff]
    %v156 = vld [vmem:[#allocation8 + $0x10] sm:$0xff]
    %v157 = vld [vmem:[#allocation8 + $0x18] sm:$0xff]
    %v158 = vld [vmem:[%s6] sm:$0x1]
    %v160 = vperm.slane %v158, 0
    %v163 = vsel %vm97, %v153, 0
    %165 = vmatpush.msra.mxu0 0.0
    %166 = vmatpush.msra.mxu0 0.0
    %167 = vmatpush.msra.mxu0 0.0
    %168 = vmatpush.msra.mxu0 0.0
    %169 = vmatpush.msra.mxu0 0.0
    %170 = vmatpush.msra.mxu0 0.0
    %171 = vmatpush.msra.mxu0 0.0
    %172 = vmatpush.msra.mxu0 0.0
    %173 = vmatpush.msra.mxu0 0.0
    %174 = vmatpush.msra.mxu0 0.0
    %175 = vmatpush.msra.mxu0 0.0
    %176 = vmatpush.msra.mxu0 0.0
    %177 = vmatpush.msra.mxu0 %v157
    %178 = vmatpush.msra.mxu0 %v156
    %179 = vmatpush.msra.mxu0 %v155
    %180 = vmatpush.msra.mxu0 %v154
    %181 = vmatmul.f32.gmra.mxu0 %v163
    %v182 = vpop.f32.mrf.mxu0
    %v183 = vadd.f32 %v160, %v182
    %184 = vdwg.mxu0
    %185 = vst [vmem:[#allocation10] sm:$0xff] %v183
    // Predicated region
    $region46: #{tpu_custom_call.1} parent=1 // pred_check
      _
    $region47: #{tpu_custom_call.1} parent=1 // pred_check_branch
      %187 = sbr.rel (0) target = $region49
    $region48: #{tpu_custom_call.1} parent=1 // pred_region
      %189 = vsyncadd [#allocation4], 0
      %s191 = sshll.u32 [#allocation10], 4
      %s192 = int_to_ptr.vmem [resolvable:$true] %s191
      %s193 = sshll.u32 %s7, 4
      %s194 = int_to_ptr.hbm [resolvable:$true] %s193
      %196 = dma.vmem_to_hbm [thread:$0]  %s192, 128, %s194, [#allocation4]
    $region49: #{tpu_custom_call.1} parent=1 // pred_fallthru
      _
    // Predicated region
    $region50: #{tpu_custom_call.1} parent=1 // pred_check
      _
    $region51: #{tpu_custom_call.1} parent=1 // pred_check_branch
      %198 = sbr.rel (0) target = $region53
    $region52: #{tpu_custom_call.1} parent=1 // pred_region
      %200 = dma.done [#allocation4], 128
    $region53: #{tpu_custom_call.1} parent=1 // pred_fallthru
      _
    %201 = vsyncpa [#allocation3], 1
    %202 = vsyncpa [#allocation6], 1
    %203 = vsyncpa [#allocation9], 1
    %204 = vsyncpa [#allocation4], 1

// kernel: tpu_custom_call.1
$region0: #{tpu_custom_call.1}
  #allocation0 [shape = 'u32[]', space=smem, size = 0x4, offset = 0x4, fixed_abs, tag = 'smem constant byte address 0x4 - core index']
  #allocation1 [shape = 'u32[72,128]{1,0:T(1,128)}', space=vmem, size = 0x9000, scoped, tag = 'internal scratch']
  %s0 = inlined_call_operand.hbm [shape: f32[8,32], index: 0, kind: input, shape index: {}]
  %s1 = inlined_call_operand.hbm [shape: f32[32,32], index: 1, kind: input, shape index: {}]
  %s2 = inlined_call_operand.vmem [shape: f32[1,32], index: 2, kind: input, shape index: {}]
  %s3 = inlined_call_operand.hbm [shape: f32[32,32], index: 3, kind: input, shape index: {}]
  %s4 = inlined_call_operand.vmem [shape: f32[1,32], index: 4, kind: input, shape index: {}]
  %s5 = inlined_call_operand.hbm [shape: f32[32,128], index: 5, kind: input, shape index: {}]
  %s6 = inlined_call_operand.vmem [shape: f32[1,128], index: 6, kind: input, shape index: {}]
  %s7 = inlined_call_operand.hbm [shape: f32[8,128], index: 7, kind: output, shape index: {}]
  %s8 = sld [smem:[#allocation0]]
  $region54: #{tpu_custom_call.1} parent=0
    _
  %s10 = ssub.s32 1, %s8
  %s11 = scalar_select 0, %s10, %s8
  $region1: #{tpu_custom_call.1} parent=0
    #allocation2 [shape = 'u8[4096]{0}', space=vmem, size = 0x1000, scoped, tag = 'input window, operand 0, single buffered']
    #allocation3 [shape = 's32[1]{0}', space=sflag, size = 0x4, scoped, tag = 'scoped memory for tpu_custom_call.1']
    #allocation4 [shape = 's32[1]{0}', space=sflag, size = 0x4, scoped, tag = 'scoped memory for tpu_custom_call.1']
    #allocation5 [shape = 'u8[16384]{0}', space=vmem, size = 0x4000, scoped, tag = 'input window, operand 1, single buffered']
    #allocation6 [shape = 's32[1]{0}', space=sflag, size = 0x4, scoped, tag = 'scoped memory for tpu_custom_call.1']
    #allocation7 [shape = 'u8[16384]{0}', space=vmem, size = 0x4000, scoped, tag = 'input window, operand 3, single buffered']
    #allocation8 [shape = 'u8[16384]{0}', space=vmem, size = 0x4000, scoped, tag = 'input window, operand 5, single buffered']
    #allocation9 [shape = 's32[1]{0}', space=sflag, size = 0x4, scoped, tag = 'scoped memory for tpu_custom_call.1']
    #allocation10 [shape = 'u8[4096]{0}', space=vmem, size = 0x1000, scoped, tag = 'output window, operand 0, single buffered']
    %12 = vsyncpa [#allocation3], 0
    %13 = vsyncpa [#allocation6], 0
    %14 = vsyncpa [#allocation9], 0
    %15 = vsyncpa [#allocation4], 0
    // Predicated region
    $region2: #{tpu_custom_call.1} parent=1 // pred_check
      _
    $region3: #{tpu_custom_call.1} parent=1 // pred_check_branch
      %17 = sbr.rel (0) target = $region5
    $region4: #{tpu_custom_call.1} parent=1 // pred_region
      %19 = vsyncadd [#allocation3], 0
      %s21 = sshll.u32 %s0, 4
      %s22 = int_to_ptr.hbm [resolvable:$true] %s21
      %s23 = sshll.u32 [#allocation2], 4
      %s24 = int_to_ptr.vmem [resolvable:$true] %s23
      %26 = dma.hbm_to_vmem [thread:$0]  %s22, 128, %s24, [#allocation3]
    $region5: #{tpu_custom_call.1} parent=1 // pred_fallthru
      _
    // Predicated region
    $region6: #{tpu_custom_call.1} parent=1 // pred_check
      _
    $region7: #{tpu_custom_call.1} parent=1 // pred_check_branch
      %28 = sbr.rel (0) target = $region9
    $region8: #{tpu_custom_call.1} parent=1 // pred_region
      %30 = vsyncadd [#allocation6], 0
      %s31 = sshll.u32 %s1, 4
      %s32 = int_to_ptr.hbm [resolvable:$true] %s31
      %s33 = sshll.u32 [#allocation5], 4
      %s34 = int_to_ptr.vmem [resolvable:$true] %s33
      %39 = dma.hbm_to_vmem [thread:$0]  %s32, 512, %s34, [#allocation6], 128, 128, 8
    $region9: #{tpu_custom_call.1} parent=1 // pred_fallthru
      _
    // Predicated region
    $region10: #{tpu_custom_call.1} parent=1 // pred_check
      _
    $region11: #{tpu_custom_call.1} parent=1 // pred_check_branch
      %41 = sbr.rel (0) target = $region13
    $region12: #{tpu_custom_call.1} parent=1 // pred_region
      _
    $region13: #{tpu_custom_call.1} parent=1 // pred_fallthru
      _
    // Predicated region
    $region14: #{tpu_custom_call.1} parent=1 // pred_check
      _
    $region15: #{tpu_custom_call.1} parent=1 // pred_check_branch
      %43 = sbr.rel (0) target = $region17
    $region16: #{tpu_custom_call.1} parent=1 // pred_region
      %45 = vsyncadd [#allocation6], 0
      %s46 = sshll.u32 %s3, 4
      %s47 = int_to_ptr.hbm [resolvable:$true] %s46
      %s48 = sshll.u32 [#allocation7], 4
      %s49 = int_to_ptr.vmem [resolvable:$true] %s48
      %54 = dma.hbm_to_vmem [thread:$0]  %s47, 512, %s49, [#allocation6], 128, 128, 8
    $region17: #{tpu_custom_call.1} parent=1 // pred_fallthru
      _
    // Predicated region
    $region18: #{tpu_custom_call.1} parent=1 // pred_check
      _
    $region19: #{tpu_custom_call.1} parent=1 // pred_check_branch
      %56 = sbr.rel (0) target = $region21
    $region20: #{tpu_custom_call.1} parent=1 // pred_region
      _
    $region21: #{tpu_custom_call.1} parent=1 // pred_fallthru
      _
    // Predicated region
    $region22: #{tpu_custom_call.1} parent=1 // pred_check
      _
    $region23: #{tpu_custom_call.1} parent=1 // pred_check_branch
      %58 = sbr.rel (0) target = $region25
    $region24: #{tpu_custom_call.1} parent=1 // pred_region
      %60 = vsyncadd [#allocation9], 0
      %s61 = sshll.u32 %s5, 4
      %s62 = int_to_ptr.hbm [resolvable:$true] %s61
      %s63 = sshll.u32 [#allocation8], 4
      %s64 = int_to_ptr.vmem [resolvable:$true] %s63
      %69 = dma.hbm_to_vmem [thread:$0]  %s62, 512, %s64, [#allocation9], 128, 128, 8
    $region25: #{tpu_custom_call.1} parent=1 // pred_fallthru
      _
    // Predicated region
    $region26: #{tpu_custom_call.1} parent=1 // pred_check
      _
    $region27: #{tpu_custom_call.1} parent=1 // pred_check_branch
      %71 = sbr.rel (0) target = $region29
    $region28: #{tpu_custom_call.1} parent=1 // pred_region
      _
    $region29: #{tpu_custom_call.1} parent=1 // pred_fallthru
      _
    // Predicated region
    $region30: #{tpu_custom_call.1} parent=1 // pred_check
      _
    $region31: #{tpu_custom_call.1} parent=1 // pred_check_branch
      %73 = sbr.rel (0) target = $region33
    $region32: #{tpu_custom_call.1} parent=1 // pred_region
      %75 = dma.done [#allocation3], 128
    $region33: #{tpu_custom_call.1} parent=1 // pred_fallthru
      _
    // Predicated region
    $region34: #{tpu_custom_call.1} parent=1 // pred_check
      _
    $region35: #{tpu_custom_call.1} parent=1 // pred_check_branch
      %77 = sbr.rel (0) target = $region37
    $region36: #{tpu_custom_call.1} parent=1 // pred_region
      %79 = dma.done [#allocation6], 512
    $region37: #{tpu_custom_call.1} parent=1 // pred_fallthru
      _
    // Predicated region
    $region38: #{tpu_custom_call.1} parent=1 // pred_check
      _
    $region39: #{tpu_custom_call.1} parent=1 // pred_check_branch
      %81 = sbr.rel (0) target = $region41
    $region40: #{tpu_custom_call.1} parent=1 // pred_region
      %83 = dma.done [#allocation6], 512
    $region41: #{tpu_custom_call.1} parent=1 // pred_fallthru
      _
    // Predicated region
    $region42: #{tpu_custom_call.1} parent=1 // pred_check
      _
    $region43: #{tpu_custom_call.1} parent=1 // pred_check_branch
      %85 = sbr.rel (0) target = $region45
    $region44: #{tpu_custom_call.1} parent=1 // pred_region
      %87 = dma.done [#allocation9], 512
    $region45: #{tpu_custom_call.1} parent=1 // pred_fallthru
      _
    %v88 = vld [vmem:[#allocation2] sm:$0xff]
    %v89 = vld [vmem:[#allocation5] sm:$0xff]
    %v90 = vld [vmem:[#allocation5 + $0x8] sm:$0xff]
    %v91 = vld [vmem:[#allocation5 + $0x10] sm:$0xff]
    %v92 = vld [vmem:[#allocation5 + $0x18] sm:$0xff]
    %v93 = vld [vmem:[%s2] sm:$0x1]
    %v95 = vperm.slane %v93, 0
    %vm97 = vcmask 261120
    %v99 = vsel %vm97, %v88, 0
    %101 = vmatpush.msra.mxu0 0.0
    %102 = vmatpush.msra.mxu0 0.0
    %103 = vmatpush.msra.mxu0 0.0
    %104 = vmatpush.msra.mxu0 0.0
    %105 = vmatpush.msra.mxu0 0.0
    %106 = vmatpush.msra.mxu0 0.0
    %107 = vmatpush.msra.mxu0 0.0
    %108 = vmatpush.msra.mxu0 0.0
    %109 = vmatpush.msra.mxu0 0.0
    %110 = vmatpush.msra.mxu0 0.0
    %111 = vmatpush.msra.mxu0 0.0
    %112 = vmatpush.msra.mxu0 0.0
    %113 = vmatpush.msra.mxu0 %v92
    %114 = vmatpush.msra.mxu0 %v91
    %115 = vmatpush.msra.mxu0 %v90
    %116 = vmatpush.msra.mxu0 %v89
    %117 = vmatmul.f32.gmra.mxu0 %v99
    %v118 = vpop.f32.mrf.mxu0
    %v119 = vadd.f32 %v95, %v118
    %120 = vdwg.mxu0
    %v121 = vtanh.pop %v119
    %v122 = vld [vmem:[#allocation7] sm:$0xff]
    %v123 = vld [vmem:[#allocation7 + $0x8] sm:$0xff]
    %v124 = vld [vmem:[#allocation7 + $0x10] sm:$0xff]
    %v125 = vld [vmem:[#allocation7 + $0x18] sm:$0xff]
    %v126 = vld [vmem:[%s4] sm:$0x1]
    %v128 = vperm.slane %v126, 0
    %v131 = vsel %vm97, %v121, 0
    %133 = vmatpush.msra.mxu0 0.0
    %134 = vmatpush.msra.mxu0 0.0
    %135 = vmatpush.msra.mxu0 0.0
    %136 = vmatpush.msra.mxu0 0.0
    %137 = vmatpush.msra.mxu0 0.0
    %138 = vmatpush.msra.mxu0 0.0
    %139 = vmatpush.msra.mxu0 0.0
    %140 = vmatpush.msra.mxu0 0.0
    %141 = vmatpush.msra.mxu0 0.0
    %142 = vmatpush.msra.mxu0 0.0
    %143 = vmatpush.msra.mxu0 0.0
    %144 = vmatpush.msra.mxu0 0.0
    %145 = vmatpush.msra.mxu0 %v125
    %146 = vmatpush.msra.mxu0 %v124
    %147 = vmatpush.msra.mxu0 %v123
    %148 = vmatpush.msra.mxu0 %v122
    %149 = vmatmul.f32.gmra.mxu0 %v131
    %v150 = vpop.f32.mrf.mxu0
    %v151 = vadd.f32 %v128, %v150
    %152 = vdwg.mxu0
    %v153 = vtanh.pop %v151
    %v154 = vld [vmem:[#allocation8] sm:$0xff]
    %v155 = vld [vmem:[#allocation8 + $0x8] sm:$0xff]
    %v156 = vld [vmem:[#allocation8 + $0x10] sm:$0xff]
    %v157 = vld [vmem:[#allocation8 + $0x18] sm:$0xff]
    %v158 = vld [vmem:[%s6] sm:$0x1]
    %v160 = vperm.slane %v158, 0
    %v163 = vsel %vm97, %v153, 0
    %165 = vmatpush.msra.mxu0 0.0
    %166 = vmatpush.msra.mxu0 0.0
    %167 = vmatpush.msra.mxu0 0.0
    %168 = vmatpush.msra.mxu0 0.0
    %169 = vmatpush.msra.mxu0 0.0
    %170 = vmatpush.msra.mxu0 0.0
    %171 = vmatpush.msra.mxu0 0.0
    %172 = vmatpush.msra.mxu0 0.0
    %173 = vmatpush.msra.mxu0 0.0
    %174 = vmatpush.msra.mxu0 0.0
    %175 = vmatpush.msra.mxu0 0.0
    %176 = vmatpush.msra.mxu0 0.0
    %177 = vmatpush.msra.mxu0 %v157
    %178 = vmatpush.msra.mxu0 %v156
    %179 = vmatpush.msra.mxu0 %v155
    %180 = vmatpush.msra.mxu0 %v154
    %181 = vmatmul.f32.gmra.mxu0 %v163
    %v182 = vpop.f32.mrf.mxu0
    %v183 = vadd.f32 %v160, %v182
    %184 = vdwg.mxu0
    %185 = vst [vmem:[#allocation10] sm:$0xff] %v183
    // Predicated region
    $region46: #{tpu_custom_call.1} parent=1 // pred_check
      _
    $region47: #{tpu_custom_call.1} parent=1 // pred_check_branch
      %187 = sbr.rel (0) target = $region49
    $region48: #{tpu_custom_call.1} parent=1 // pred_region
      %189 = vsyncadd [#allocation4], 0
      %s191 = sshll.u32 [#allocation10], 4
      %s192 = int_to_ptr.vmem [resolvable:$true] %s191
      %s193 = sshll.u32 %s7, 4
      %s194 = int_to_ptr.hbm [resolvable:$true] %s193
      %196 = dma.vmem_to_hbm [thread:$0]  %s192, 128, %s194, [#allocation4]
    $region49: #{tpu_custom_call.1} parent=1 // pred_fallthru
      _
    // Predicated region
    $region50: #{tpu_custom_call.1} parent=1 // pred_check
      _
    $region51: #{tpu_custom_call.1} parent=1 // pred_check_branch
      %198 = sbr.rel (0) target = $region53
    $region52: #{tpu_custom_call.1} parent=1 // pred_region
      %200 = dma.done [#allocation4], 128
    $region53: #{tpu_custom_call.1} parent=1 // pred_fallthru
      _
    %201 = vsyncpa [#allocation3], 1
    %202 = vsyncpa [#allocation6], 1
    %203 = vsyncpa [#allocation9], 1
    %204 = vsyncpa [#allocation4], 1

</llo_original>
